<compile_context>
chip_gen: v6e
topology: v6e:2x2x1
jax: 0.10.0
libtpu: 0.0.40
codegen_flags: <defaults>
</compile_context>

<pallas_src>
import jax
import jax.numpy as jnp
from jax.experimental import pallas as pl
from jax.experimental.pallas import tpu as pltpu


def explainer_kernel(u_ref, it_ref,
                     wu_ref, bu_ref,
                     wi_ref, bi_ref,
                     w1u_ref, w1i_ref, b1_ref,
                     w2_ref, b2_ref,
                     out_ref):
    cdt = wu_ref.dtype  # MXU compute dtype (bf16)

    # users_fc / items_fc  (bf16 x bf16 -> f32 accumulate)
    user_out = jnp.dot(u_ref[...], wu_ref[...],
                       preferred_element_type=jnp.float32) + bu_ref[...]
    item_out = jnp.dot(it_ref[...], wi_ref[...],
                       preferred_element_type=jnp.float32) + bi_ref[...]

    # bottleneck: Tanh -> Linear(2H -> H) -> Tanh -> Linear(H -> U) -> Sigmoid
    # tanh(concat(u, i)) @ W1 == tanh(u) @ W1[:H] + tanh(i) @ W1[H:]
    tu = jnp.tanh(user_out).astype(cdt)
    ti = jnp.tanh(item_out).astype(cdt)
    h = (jnp.dot(tu, w1u_ref[...], preferred_element_type=jnp.float32)
         + jnp.dot(ti, w1i_ref[...], preferred_element_type=jnp.float32)
         + b1_ref[...])
    h = jnp.tanh(h).astype(cdt)

    logits = jnp.dot(h, w2_ref[...],
                     preferred_element_type=jnp.float32) + b2_ref[...]
    out_ref[...] = jax.nn.sigmoid(logits)


def _round_up(n, m):
    return int((n + m - 1) // m) * m


def _pad2(a, rows, cols):
    r, c = a.shape
    if r == rows and c == cols:
        return a
    return jnp.pad(a, ((0, rows - r), (0, cols - c)))


def prepare_params(params, *, compute_dtype=jnp.bfloat16):
    """One-time conversion of f32 training params into kernel-ready form:
    bf16 matmul weights, f32 biases, W1 pre-split, all feature dims padded
    to multiples of 128 with zeros (zero padding is inert for this network)."""
    Uin, H = params["w_user"].shape
    Iin = params["w_item"].shape[0]
    U = params["w2"].shape[1]

    Uinp = _round_up(Uin, 128)
    Iinp = _round_up(Iin, 128)
    Hp = _round_up(H, 128)
    Up = _round_up(U, 128)

    return dict(
        w_user=_pad2(params["w_user"], Uinp, Hp).astype(compute_dtype),
        b_user=_pad2(params["b_user"], 1, Hp).astype(jnp.float32),
        w_item=_pad2(params["w_item"], Iinp, Hp).astype(compute_dtype),
        b_item=_pad2(params["b_item"], 1, Hp).astype(jnp.float32),
        w1_u=_pad2(params["w1"][:H], Hp, Hp).astype(compute_dtype),
        w1_i=_pad2(params["w1"][H:], Hp, Hp).astype(compute_dtype),
        b1=_pad2(params["b1"], 1, Hp).astype(jnp.float32),
        w2=_pad2(params["w2"], Hp, Up).astype(compute_dtype),
        b2=_pad2(params["b2"], 1, Up).astype(jnp.float32),
        in_user=Uin, in_item=Iin, out_features=U,
    )


def explainer_forward(user, item, kp, *, block_b=256):
    """Batch-tiled pallas_call. kp = prepare_params(init_params(...))."""
    B = user.shape[0]
    U = kp["out_features"]
    Uin, Iin = kp["in_user"], kp["in_item"]
    Uinp, Hp = kp["w_user"].shape
    Iinp = kp["w_item"].shape[0]
    Up = kp["w2"].shape[1]
    cdt = kp["w_user"].dtype

    # Cast inputs to the MXU compute dtype and lane-pad the feature dims if
    # needed (zero columns hit zero weight rows -> no effect). For the ideal
    # setup the producer already emits bf16, 128-aligned features.
    user = user.astype(cdt)
    item = item.astype(cdt)
    if Uinp != Uin:
        user = jnp.pad(user, ((0, 0), (0, Uinp - Uin)))
    if Iinp != Iin:
        item = jnp.pad(item, ((0, 0), (0, Iinp - Iin)))

    TB = B if B <= block_b else block_b
    grid = (pl.cdiv(B, TB),)

    in_bytes = jnp.dtype(cdt).itemsize
    w_bytes = (Uinp * Hp + Iinp * Hp + 2 * Hp * Hp + Hp * Up) * in_bytes \
        + (3 * Hp + Up) * 4
    io_tile_bytes = TB * (Uinp + Iinp) * in_bytes + TB * Up * 4
    vmem_limit = min(int(2 * io_tile_bytes + w_bytes) + (16 << 20), 64 << 20)

    cost = pl.CostEstimate(
        flops=2 * B * (Uinp * Hp + Iinp * Hp + 2 * Hp * Hp + Hp * Up),
        transcendentals=B * (3 * Hp + Up),
        bytes_accessed=B * ((Uinp + Iinp) * in_bytes + Up * 4) + w_bytes,
    )

    out = pl.pallas_call(
        explainer_kernel,
        out_shape=jax.ShapeDtypeStruct((B, Up), jnp.float32),
        grid=grid,
        in_specs=[
            pl.BlockSpec((TB, Uinp), lambda i: (i, 0)),   # user tile
            pl.BlockSpec((TB, Iinp), lambda i: (i, 0)),   # item tile
            pl.BlockSpec((Uinp, Hp), lambda i: (0, 0)),   # w_user  (resident)
            pl.BlockSpec((1, Hp), lambda i: (0, 0)),      # b_user
            pl.BlockSpec((Iinp, Hp), lambda i: (0, 0)),   # w_item
            pl.BlockSpec((1, Hp), lambda i: (0, 0)),      # b_item
            pl.BlockSpec((Hp, Hp), lambda i: (0, 0)),     # w1 (user half)
            pl.BlockSpec((Hp, Hp), lambda i: (0, 0)),     # w1 (item half)
            pl.BlockSpec((1, Hp), lambda i: (0, 0)),      # b1
            pl.BlockSpec((Hp, Up), lambda i: (0, 0)),     # w2 (lane-padded)
            pl.BlockSpec((1, Up), lambda i: (0, 0)),      # b2 (lane-padded)
        ],
        out_specs=pl.BlockSpec((TB, Up), lambda i: (i, 0)),
        compiler_params=pltpu.CompilerParams(
            dimension_semantics=("parallel",),
            vmem_limit_bytes=vmem_limit,
        ),
        cost_estimate=cost,
    )(user, item,
      kp["w_user"], kp["b_user"],
      kp["w_item"], kp["b_item"],
      kp["w1_u"], kp["w1_i"], kp["b1"],
      kp["w2"], kp["b2"])

    if Up != U:
        out = out[:, :U]
    return out


def init_params(key, user_size, item_size, hidden_size):
    """Deterministic f32 init mimicking nn.Linear's U(-1/sqrt(in), 1/sqrt(in)).
    Weights are (in_features, out_features); biases are (1, out_features)."""
    ks = jax.random.split(key, 8)

    def lin(kw, kb, fan_in, fan_out):
        bound = 1.0 / jnp.sqrt(fan_in)
        w = jax.random.uniform(kw, (fan_in, fan_out), jnp.float32, -bound, bound)
        b = jax.random.uniform(kb, (1, fan_out), jnp.float32, -bound, bound)
        return w, b

    w_user, b_user = lin(ks[0], ks[1], user_size, hidden_size)
    w_item, b_item = lin(ks[2], ks[3], item_size, hidden_size)
    w1, b1 = lin(ks[4], ks[5], 2 * hidden_size, hidden_size)
    w2, b2 = lin(ks[6], ks[7], hidden_size, user_size)
    return dict(w_user=w_user, b_user=b_user,
                w_item=w_item, b_item=b_item,
                w1=w1, b1=b1, w2=w2, b2=b2)


def explainer_reference(user, item, p):
    """Pure-JAX f32 reference of the PyTorch forward, for a sanity check."""
    hp = jax.lax.Precision.HIGHEST
    uo = jnp.dot(user, p["w_user"], precision=hp) + p["b_user"]
    io = jnp.dot(item, p["w_item"], precision=hp) + p["b_item"]
    comb = jnp.tanh(jnp.concatenate([uo, io], axis=-1))
    h = jnp.tanh(jnp.dot(comb, p["w1"], precision=hp) + p["b1"])
    return jax.nn.sigmoid(jnp.dot(h, p["w2"], precision=hp) + p["b2"])


if __name__ == "__main__":
    # Small, shape-consistent sizes (the real module uses user_size=item_size=3381).
    B, USER_SIZE, ITEM_SIZE, HIDDEN = 2, 256, 128, 32

    key = jax.random.PRNGKey(0)
    k_u, k_i, k_p = jax.random.split(key, 3)

    user = jax.random.uniform(k_u, (B, USER_SIZE), jnp.float32)   # user interaction vector
    item = jax.random.uniform(k_i, (B, ITEM_SIZE), jnp.float32)   # item one-hot-ish vector

    params = init_params(k_p, USER_SIZE, ITEM_SIZE, HIDDEN)
    kparams = prepare_params(params)   # bf16 weights, lane-padded dims, split w1

    out = explainer_forward(user, item, kparams)
    out = jax.block_until_ready(out)

    ref = explainer_reference(user, item, params)
    assert out.shape == (B, USER_SIZE)
    assert bool(jnp.all(jnp.isfinite(out)))
    assert jnp.allclose(out, ref, atol=2e-2, rtol=2e-2)

    print("KERNEL_OK")
</pallas_src>

<mosaic_0001>
module attributes {stable_mosaic.version = 11 : i64} {
  func.func @explainer_kernel(%arg0: i32, %arg1: memref<2x256xbf16, #tpu.memory_space<vmem>>, %arg2: memref<2x128xbf16, #tpu.memory_space<vmem>>, %arg3: memref<256x128xbf16, #tpu.memory_space<vmem>>, %arg4: memref<1x128xf32, #tpu.memory_space<vmem>>, %arg5: memref<128x128xbf16, #tpu.memory_space<vmem>>, %arg6: memref<1x128xf32, #tpu.memory_space<vmem>>, %arg7: memref<128x128xbf16, #tpu.memory_space<vmem>>, %arg8: memref<128x128xbf16, #tpu.memory_space<vmem>>, %arg9: memref<1x128xf32, #tpu.memory_space<vmem>>, %arg10: memref<128x256xbf16, #tpu.memory_space<vmem>>, %arg11: memref<1x256xf32, #tpu.memory_space<vmem>>, %arg12: memref<2x256xf32, #tpu.memory_space<vmem>>) attributes {dimension_semantics = [#tpu.dimension_semantics<parallel>], iteration_bounds = array<i64: 1>, scalar_prefetch = 0 : i64, scratch_operands = 0 : i64, tpu.core_type = #tpu.core_type<tc>, window_params = [{transform_indices = @transform_0, window_bounds = array<i64: 2, 256>}, {transform_indices = @transform_1, window_bounds = array<i64: 2, 128>}, {pipeline_mode = #tpu.pipeline_mode<synchronous>, transform_indices = @transform_2, window_bounds = array<i64: 256, 128>}, {pipeline_mode = #tpu.pipeline_mode<synchronous>, transform_indices = @transform_3, window_bounds = array<i64: 1, 128>}, {pipeline_mode = #tpu.pipeline_mode<synchronous>, transform_indices = @transform_4, window_bounds = array<i64: 128, 128>}, {pipeline_mode = #tpu.pipeline_mode<synchronous>, transform_indices = @transform_5, window_bounds = array<i64: 1, 128>}, {pipeline_mode = #tpu.pipeline_mode<synchronous>, transform_indices = @transform_6, window_bounds = array<i64: 128, 128>}, {pipeline_mode = #tpu.pipeline_mode<synchronous>, transform_indices = @transform_7, window_bounds = array<i64: 128, 128>}, {pipeline_mode = #tpu.pipeline_mode<synchronous>, transform_indices = @transform_8, window_bounds = array<i64: 1, 128>}, {pipeline_mode = #tpu.pipeline_mode<synchronous>, transform_indices = @transform_9, window_bounds = array<i64: 128, 256>}, {pipeline_mode = #tpu.pipeline_mode<synchronous>, transform_indices = @transform_10, window_bounds = array<i64: 1, 256>}, {transform_indices = @transform_11, window_bounds = array<i64: 2, 256>}]} {
    %c0 = arith.constant 0 : index
    %c0_0 = arith.constant 0 : index
    %0 = vector.load %arg1[%c0, %c0_0] : memref<2x256xbf16, #tpu.memory_space<vmem>>, vector<2x256xbf16>
    %c0_1 = arith.constant 0 : index
    %c0_2 = arith.constant 0 : index
    %1 = vector.load %arg3[%c0_1, %c0_2] : memref<256x128xbf16, #tpu.memory_space<vmem>>, vector<256x128xbf16>
    %cst = arith.constant dense<0.000000e+00> : vector<2x128xf32>
    %2 = tpu.matmul %0, %1, %cst {dimension_numbers = #tpu.dot_dimension_numbers<[1], [0], [0], [1], [0, 0, 1, 1], [], []>} : vector<2x256xbf16>, vector<256x128xbf16>, vector<2x128xf32> -> vector<2x128xf32>
    %c0_3 = arith.constant 0 : index
    %c0_4 = arith.constant 0 : index
    %3 = vector.load %arg4[%c0_3, %c0_4] : memref<1x128xf32, #tpu.memory_space<vmem>>, vector<1x128xf32>
    %4 = vector.broadcast %3 : vector<1x128xf32> to vector<2x128xf32>
    %5 = arith.addf %2, %4 : vector<2x128xf32>
    %c0_5 = arith.constant 0 : index
    %c0_6 = arith.constant 0 : index
    %6 = vector.load %arg2[%c0_5, %c0_6] : memref<2x128xbf16, #tpu.memory_space<vmem>>, vector<2x128xbf16>
    %c0_7 = arith.constant 0 : index
    %c0_8 = arith.constant 0 : index
    %7 = vector.load %arg5[%c0_7, %c0_8] : memref<128x128xbf16, #tpu.memory_space<vmem>>, vector<128x128xbf16>
    %cst_9 = arith.constant dense<0.000000e+00> : vector<2x128xf32>
    %8 = tpu.matmul %6, %7, %cst_9 {dimension_numbers = #tpu.dot_dimension_numbers<[1], [0], [0], [1], [0, 0, 1, 1], [], []>} : vector<2x128xbf16>, vector<128x128xbf16>, vector<2x128xf32> -> vector<2x128xf32>
    %c0_10 = arith.constant 0 : index
    %c0_11 = arith.constant 0 : index
    %9 = vector.load %arg6[%c0_10, %c0_11] : memref<1x128xf32, #tpu.memory_space<vmem>>, vector<1x128xf32>
    %10 = vector.broadcast %9 : vector<1x128xf32> to vector<2x128xf32>
    %11 = arith.addf %8, %10 : vector<2x128xf32>
    %12 = math.tanh %5 : vector<2x128xf32>
    %13 = arith.truncf %12 : vector<2x128xf32> to vector<2x128xbf16>
    %14 = math.tanh %11 : vector<2x128xf32>
    %15 = arith.truncf %14 : vector<2x128xf32> to vector<2x128xbf16>
    %c0_12 = arith.constant 0 : index
    %c0_13 = arith.constant 0 : index
    %16 = vector.load %arg7[%c0_12, %c0_13] : memref<128x128xbf16, #tpu.memory_space<vmem>>, vector<128x128xbf16>
    %cst_14 = arith.constant dense<0.000000e+00> : vector<2x128xf32>
    %17 = tpu.matmul %13, %16, %cst_14 {dimension_numbers = #tpu.dot_dimension_numbers<[1], [0], [0], [1], [0, 0, 1, 1], [], []>} : vector<2x128xbf16>, vector<128x128xbf16>, vector<2x128xf32> -> vector<2x128xf32>
    %c0_15 = arith.constant 0 : index
    %c0_16 = arith.constant 0 : index
    %18 = vector.load %arg8[%c0_15, %c0_16] : memref<128x128xbf16, #tpu.memory_space<vmem>>, vector<128x128xbf16>
    %cst_17 = arith.constant dense<0.000000e+00> : vector<2x128xf32>
    %19 = tpu.matmul %15, %18, %cst_17 {dimension_numbers = #tpu.dot_dimension_numbers<[1], [0], [0], [1], [0, 0, 1, 1], [], []>} : vector<2x128xbf16>, vector<128x128xbf16>, vector<2x128xf32> -> vector<2x128xf32>
    %20 = arith.addf %17, %19 : vector<2x128xf32>
    %c0_18 = arith.constant 0 : index
    %c0_19 = arith.constant 0 : index
    %21 = vector.load %arg9[%c0_18, %c0_19] : memref<1x128xf32, #tpu.memory_space<vmem>>, vector<1x128xf32>
    %22 = vector.broadcast %21 : vector<1x128xf32> to vector<2x128xf32>
    %23 = arith.addf %20, %22 : vector<2x128xf32>
    %24 = math.tanh %23 : vector<2x128xf32>
    %25 = arith.truncf %24 : vector<2x128xf32> to vector<2x128xbf16>
    %c0_20 = arith.constant 0 : index
    %c0_21 = arith.constant 0 : index
    %26 = vector.load %arg10[%c0_20, %c0_21] : memref<128x256xbf16, #tpu.memory_space<vmem>>, vector<128x256xbf16>
    %cst_22 = arith.constant dense<0.000000e+00> : vector<2x256xf32>
    %27 = tpu.matmul %25, %26, %cst_22 {dimension_numbers = #tpu.dot_dimension_numbers<[1], [0], [0], [1], [0, 0, 1, 1], [], []>} : vector<2x128xbf16>, vector<128x256xbf16>, vector<2x256xf32> -> vector<2x256xf32>
    %c0_23 = arith.constant 0 : index
    %c0_24 = arith.constant 0 : index
    %28 = vector.load %arg11[%c0_23, %c0_24] : memref<1x256xf32, #tpu.memory_space<vmem>>, vector<1x256xf32>
    %29 = vector.broadcast %28 : vector<1x256xf32> to vector<2x256xf32>
    %30 = arith.addf %27, %29 : vector<2x256xf32>
    %31 = arith.negf %30 : vector<2x256xf32>
    %32 = math.exp %31 : vector<2x256xf32>
    %cst_25 = arith.constant 1.000000e+00 : f32
    %33 = vector.broadcast %cst_25 : f32 to vector<2x256xf32>
    %34 = arith.addf %33, %32 : vector<2x256xf32>
    %35 = arith.divf %33, %34 : vector<2x256xf32>
    %c0_26 = arith.constant 0 : index
    %c0_27 = arith.constant 0 : index
    %36 = vector.load %arg12[%c0_26, %c0_27] : memref<2x256xf32, #tpu.memory_space<vmem>>, vector<2x256xf32>
    tpu.vector_store %arg12[%c0_26, %c0_27], %35 {strides = array<i32>} : memref<2x256xf32, #tpu.memory_space<vmem>>, vector<2x256xf32>,
    return
  }
  func.func @transform_0(%arg0: i32) -> (i32, i32) {
    %c0_i32 = arith.constant 0 : i32
    %c0_i32_0 = arith.constant 0 : i32
    return %arg0, %c0_i32 : i32, i32
  }
  func.func @transform_1(%arg0: i32) -> (i32, i32) {
    %c0_i32 = arith.constant 0 : i32
    %c0_i32_0 = arith.constant 0 : i32
    return %arg0, %c0_i32 : i32, i32
  }
  func.func @transform_2(%arg0: i32) -> (i32, i32) {
    %c0_i32 = arith.constant 0 : i32
    %c0_i32_0 = arith.constant 0 : i32
    %c0_i32_1 = arith.constant 0 : i32
    return %c0_i32, %c0_i32_0 : i32, i32
  }
  func.func @transform_3(%arg0: i32) -> (i32, i32) {
    %c0_i32 = arith.constant 0 : i32
    %c0_i32_0 = arith.constant 0 : i32
    %c0_i32_1 = arith.constant 0 : i32
    return %c0_i32, %c0_i32_0 : i32, i32
  }
  func.func @transform_4(%arg0: i32) -> (i32, i32) {
    %c0_i32 = arith.constant 0 : i32
    %c0_i32_0 = arith.constant 0 : i32
    %c0_i32_1 = arith.constant 0 : i32
    return %c0_i32, %c0_i32_0 : i32, i32
  }
  func.func @transform_5(%arg0: i32) -> (i32, i32) {
    %c0_i32 = arith.constant 0 : i32
    %c0_i32_0 = arith.constant 0 : i32
    %c0_i32_1 = arith.constant 0 : i32
    return %c0_i32, %c0_i32_0 : i32, i32
  }
  func.func @transform_6(%arg0: i32) -> (i32, i32) {
    %c0_i32 = arith.constant 0 : i32
    %c0_i32_0 = arith.constant 0 : i32
    %c0_i32_1 = arith.constant 0 : i32
    return %c0_i32, %c0_i32_0 : i32, i32
  }
  func.func @transform_7(%arg0: i32) -> (i32, i32) {
    %c0_i32 = arith.constant 0 : i32
    %c0_i32_0 = arith.constant 0 : i32
    %c0_i32_1 = arith.constant 0 : i32
    return %c0_i32, %c0_i32_0 : i32, i32
  }
  func.func @transform_8(%arg0: i32) -> (i32, i32) {
    %c0_i32 = arith.constant 0 : i32
    %c0_i32_0 = arith.constant 0 : i32
    %c0_i32_1 = arith.constant 0 : i32
    return %c0_i32, %c0_i32_0 : i32, i32
  }
  func.func @transform_9(%arg0: i32) -> (i32, i32) {
    %c0_i32 = arith.constant 0 : i32
    %c0_i32_0 = arith.constant 0 : i32
    %c0_i32_1 = arith.constant 0 : i32
    return %c0_i32, %c0_i32_0 : i32, i32
  }
  func.func @transform_10(%arg0: i32) -> (i32, i32) {
    %c0_i32 = arith.constant 0 : i32
    %c0_i32_0 = arith.constant 0 : i32
    %c0_i32_1 = arith.constant 0 : i32
    return %c0_i32, %c0_i32_0 : i32, i32
  }
  func.func @transform_11(%arg0: i32) -> (i32, i32) {
    %c0_i32 = arith.constant 0 : i32
    %c0_i32_0 = arith.constant 0 : i32
    return %arg0, %c0_i32 : i32, i32
  }
}

</mosaic_0001>

<llo_original>
// kernel: tpu_custom_call.1
$region0: #{tpu_custom_call.1}
  #allocation0 [shape = 'u32[]', space=smem, size = 0x4, offset = 0x4, fixed_abs, tag = 'smem constant byte address 0x4 - core index']
  #allocation1 [shape = 'u32[144,128]{1,0:T(1,128)}', space=vmem, size = 0x12000, scoped, tag = 'internal scratch']
  %s0 = inlined_call_operand.hbm [shape: bf16[2,256], index: 0, kind: input, shape index: {}]
  %s1 = inlined_call_operand.vmem [shape: bf16[2,128], index: 1, kind: input, shape index: {}]
  %s2 = inlined_call_operand.hbm [shape: bf16[256,128], index: 2, kind: input, shape index: {}]
  %s3 = inlined_call_operand.vmem [shape: f32[1,128], index: 3, kind: input, shape index: {}]
  %s4 = inlined_call_operand.hbm [shape: bf16[128,128], index: 4, kind: input, shape index: {}]
  %s5 = inlined_call_operand.vmem [shape: f32[1,128], index: 5, kind: input, shape index: {}]
  %s6 = inlined_call_operand.hbm [shape: bf16[128,128], index: 6, kind: input, shape index: {}]
  %s7 = inlined_call_operand.hbm [shape: bf16[128,128], index: 7, kind: input, shape index: {}]
  %s8 = inlined_call_operand.vmem [shape: f32[1,128], index: 8, kind: input, shape index: {}]
  %s9 = inlined_call_operand.hbm [shape: bf16[128,256], index: 9, kind: input, shape index: {}]
  %s10 = inlined_call_operand.vmem [shape: f32[1,256], index: 10, kind: input, shape index: {}]
  %s11 = inlined_call_operand.hbm [shape: f32[2,256], index: 11, kind: output, shape index: {}]
  %s12 = sld [smem:[#allocation0]]
  $region78: #{tpu_custom_call.1} parent=0
    _
  %s14 = ssub.s32 1, %s12
  %s15 = scalar_select 0, %s14, %s12
  $region1: #{tpu_custom_call.1} parent=0
    #allocation2 [shape = 'u8[1024]{0}', space=vmem, size = 0x400, scoped, tag = 'input window, operand 0, single buffered']
    #allocation3 [shape = 's32[1]{0}', space=sflag, size = 0x4, scoped, tag = 'scoped memory for tpu_custom_call.1']
    #allocation4 [shape = 's32[1]{0}', space=sflag, size = 0x4, scoped, tag = 'scoped memory for tpu_custom_call.1']
    #allocation5 [shape = 'u8[65536]{0}', space=vmem, size = 0x10000, scoped, tag = 'input window, operand 2, single buffered']
    #allocation6 [shape = 's32[1]{0}', space=sflag, size = 0x4, scoped, tag = 'scoped memory for tpu_custom_call.1']
    #allocation7 [shape = 'u8[32768]{0}', space=vmem, size = 0x8000, scoped, tag = 'input window, operand 4, single buffered']
    #allocation8 [shape = 'u8[32768]{0}', space=vmem, size = 0x8000, scoped, tag = 'input window, operand 6, single buffered']
    #allocation9 [shape = 's32[1]{0}', space=sflag, size = 0x4, scoped, tag = 'scoped memory for tpu_custom_call.1']
    #allocation10 [shape = 'u8[32768]{0}', space=vmem, size = 0x8000, scoped, tag = 'input window, operand 7, single buffered']
    #allocation11 [shape = 'u8[65536]{0}', space=vmem, size = 0x10000, scoped, tag = 'input window, operand 9, single buffered']
    #allocation12 [shape = 's32[1]{0}', space=sflag, size = 0x4, scoped, tag = 'scoped memory for tpu_custom_call.1']
    #allocation13 [shape = 'u8[2048]{0}', space=vmem, size = 0x800, scoped, tag = 'output window, operand 0, single buffered']
    %16 = vsyncpa [#allocation3], 0
    %17 = vsyncpa [#allocation6], 0
    %18 = vsyncpa [#allocation9], 0
    %19 = vsyncpa [#allocation12], 0
    %20 = vsyncpa [#allocation4], 0
    // Predicated region
    $region2: #{tpu_custom_call.1} parent=1 // pred_check
      _
    $region3: #{tpu_custom_call.1} parent=1 // pred_check_branch
      %22 = sbr.rel (0) target = $region5
    $region4: #{tpu_custom_call.1} parent=1 // pred_region
      %s24 = ssub.s32 32, 32
      %25 = vsyncadd [#allocation3], %s24
      %s27 = sshll.u32 [#allocation2], 4
      %s28 = int_to_ptr.vmem [resolvable:$true] %s27
      %30 = dma.hbm_to_vmem [thread:$0]  %s0, 32, %s28, [#allocation3]
    $region5: #{tpu_custom_call.1} parent=1 // pred_fallthru
      _
    // Predicated region
    $region6: #{tpu_custom_call.1} parent=1 // pred_check
      _
    $region7: #{tpu_custom_call.1} parent=1 // pred_check_branch
      %32 = sbr.rel (0) target = $region9
    $region8: #{tpu_custom_call.1} parent=1 // pred_region
      _
    $region9: #{tpu_custom_call.1} parent=1 // pred_fallthru
      _
    // Predicated region
    $region10: #{tpu_custom_call.1} parent=1 // pred_check
      _
    $region11: #{tpu_custom_call.1} parent=1 // pred_check_branch
      %34 = sbr.rel (0) target = $region13
    $region12: #{tpu_custom_call.1} parent=1 // pred_region
      %s36 = ssub.s32 2048, 2048
      %37 = vsyncadd [#allocation6], %s36
      %s38 = sshll.u32 [#allocation5], 4
      %s39 = int_to_ptr.vmem [resolvable:$true] %s38
      %44 = dma.hbm_to_vmem [thread:$0]  %s2, 2048, %s39, [#allocation6], 64, 64, 4
    $region13: #{tpu_custom_call.1} parent=1 // pred_fallthru
      _
    // Predicated region
    $region14: #{tpu_custom_call.1} parent=1 // pred_check
      _
    $region15: #{tpu_custom_call.1} parent=1 // pred_check_branch
      %46 = sbr.rel (0) target = $region17
    $region16: #{tpu_custom_call.1} parent=1 // pred_region
      _
    $region17: #{tpu_custom_call.1} parent=1 // pred_fallthru
      _
    // Predicated region
    $region18: #{tpu_custom_call.1} parent=1 // pred_check
      _
    $region19: #{tpu_custom_call.1} parent=1 // pred_check_branch
      %48 = sbr.rel (0) target = $region21
    $region20: #{tpu_custom_call.1} parent=1 // pred_region
      %s50 = ssub.s32 1024, 1024
      %51 = vsyncadd [#allocation6], %s50
      %s52 = sshll.u32 [#allocation7], 4
      %s53 = int_to_ptr.vmem [resolvable:$true] %s52
      %58 = dma.hbm_to_vmem [thread:$0]  %s4, 1024, %s53, [#allocation6], 64, 64, 4
    $region21: #{tpu_custom_call.1} parent=1 // pred_fallthru
      _
    // Predicated region
    $region22: #{tpu_custom_call.1} parent=1 // pred_check
      _
    $region23: #{tpu_custom_call.1} parent=1 // pred_check_branch
      %60 = sbr.rel (0) target = $region25
    $region24: #{tpu_custom_call.1} parent=1 // pred_region
      _
    $region25: #{tpu_custom_call.1} parent=1 // pred_fallthru
      _
    // Predicated region
    $region26: #{tpu_custom_call.1} parent=1 // pred_check
      _
    $region27: #{tpu_custom_call.1} parent=1 // pred_check_branch
      %62 = sbr.rel (0) target = $region29
    $region28: #{tpu_custom_call.1} parent=1 // pred_region
      %s64 = ssub.s32 1024, 1024
      %65 = vsyncadd [#allocation9], %s64
      %s66 = sshll.u32 [#allocation8], 4
      %s67 = int_to_ptr.vmem [resolvable:$true] %s66
      %72 = dma.hbm_to_vmem [thread:$0]  %s6, 1024, %s67, [#allocation9], 64, 64, 4
    $region29: #{tpu_custom_call.1} parent=1 // pred_fallthru
      _
    // Predicated region
    $region30: #{tpu_custom_call.1} parent=1 // pred_check
      _
    $region31: #{tpu_custom_call.1} parent=1 // pred_check_branch
      %74 = sbr.rel (0) target = $region33
    $region32: #{tpu_custom_call.1} parent=1 // pred_region
      %s76 = ssub.s32 1024, 1024
      %77 = vsyncadd [#allocation9], %s76
      %s78 = sshll.u32 [#allocation10], 4
      %s79 = int_to_ptr.vmem [resolvable:$true] %s78
      %84 = dma.hbm_to_vmem [thread:$0]  %s7, 1024, %s79, [#allocation9], 64, 64, 4
    $region33: #{tpu_custom_call.1} parent=1 // pred_fallthru
      _
    // Predicated region
    $region34: #{tpu_custom_call.1} parent=1 // pred_check
      _
    $region35: #{tpu_custom_call.1} parent=1 // pred_check_branch
      %86 = sbr.rel (0) target = $region37
    $region36: #{tpu_custom_call.1} parent=1 // pred_region
      _
    $region37: #{tpu_custom_call.1} parent=1 // pred_fallthru
      _
    // Predicated region
    $region38: #{tpu_custom_call.1} parent=1 // pred_check
      _
    $region39: #{tpu_custom_call.1} parent=1 // pred_check_branch
      %88 = sbr.rel (0) target = $region41
    $region40: #{tpu_custom_call.1} parent=1 // pred_region
      %s90 = ssub.s32 2048, 2048
      %91 = vsyncadd [#allocation12], %s90
      %s92 = sshll.u32 [#allocation11], 4
      %s93 = int_to_ptr.vmem [resolvable:$true] %s92
      %98 = dma.hbm_to_vmem [thread:$0]  %s9, 2048, %s93, [#allocation12], 128, 128, 8
    $region41: #{tpu_custom_call.1} parent=1 // pred_fallthru
      _
    // Predicated region
    $region42: #{tpu_custom_call.1} parent=1 // pred_check
      _
    $region43: #{tpu_custom_call.1} parent=1 // pred_check_branch
      %100 = sbr.rel (0) target = $region45
    $region44: #{tpu_custom_call.1} parent=1 // pred_region
      _
    $region45: #{tpu_custom_call.1} parent=1 // pred_fallthru
      _
    // Predicated region
    $region46: #{tpu_custom_call.1} parent=1 // pred_check
      _
    $region47: #{tpu_custom_call.1} parent=1 // pred_check_branch
      %102 = sbr.rel (0) target = $region49
    $region48: #{tpu_custom_call.1} parent=1 // pred_region
      %103 = dma.done [#allocation3], 32
    $region49: #{tpu_custom_call.1} parent=1 // pred_fallthru
      _
    // Predicated region
    $region50: #{tpu_custom_call.1} parent=1 // pred_check
      _
    $region51: #{tpu_custom_call.1} parent=1 // pred_check_branch
      %105 = sbr.rel (0) target = $region53
    $region52: #{tpu_custom_call.1} parent=1 // pred_region
      %106 = dma.done [#allocation6], 2048
    $region53: #{tpu_custom_call.1} parent=1 // pred_fallthru
      _
    // Predicated region
    $region54: #{tpu_custom_call.1} parent=1 // pred_check
      _
    $region55: #{tpu_custom_call.1} parent=1 // pred_check_branch
      %108 = sbr.rel (0) target = $region57
    $region56: #{tpu_custom_call.1} parent=1 // pred_region
      %109 = dma.done [#allocation6], 1024
    $region57: #{tpu_custom_call.1} parent=1 // pred_fallthru
      _
    // Predicated region
    $region58: #{tpu_custom_call.1} parent=1 // pred_check
      _
    $region59: #{tpu_custom_call.1} parent=1 // pred_check_branch
      %111 = sbr.rel (0) target = $region61
    $region60: #{tpu_custom_call.1} parent=1 // pred_region
      %112 = dma.done [#allocation9], 1024
    $region61: #{tpu_custom_call.1} parent=1 // pred_fallthru
      _
    // Predicated region
    $region62: #{tpu_custom_call.1} parent=1 // pred_check
      _
    $region63: #{tpu_custom_call.1} parent=1 // pred_check_branch
      %114 = sbr.rel (0) target = $region65
    $region64: #{tpu_custom_call.1} parent=1 // pred_region
      %115 = dma.done [#allocation9], 1024
    $region65: #{tpu_custom_call.1} parent=1 // pred_fallthru
      _
    // Predicated region
    $region66: #{tpu_custom_call.1} parent=1 // pred_check
      _
    $region67: #{tpu_custom_call.1} parent=1 // pred_check_branch
      %117 = sbr.rel (0) target = $region69
    $region68: #{tpu_custom_call.1} parent=1 // pred_region
      %118 = dma.done [#allocation12], 2048
    $region69: #{tpu_custom_call.1} parent=1 // pred_fallthru
      _
    %v120 = vld [vmem:[#allocation2] sm:$0x3]
    %v121 = vld [vmem:[#allocation5] sm:$0xf]
    %v122 = vld [vmem:[#allocation5 + $0x4] sm:$0xf]
    %v123 = vld [vmem:[#allocation5 + $0x8] sm:$0xf]
    %v124 = vld [vmem:[#allocation5 + $0xc] sm:$0xf]
    %v125 = vld [vmem:[#allocation5 + $0x10] sm:$0xf]
    %v126 = vld [vmem:[#allocation5 + $0x14] sm:$0xf]
    %v127 = vld [vmem:[#allocation5 + $0x18] sm:$0xf]
    %v128 = vld [vmem:[#allocation5 + $0x1c] sm:$0xf]
    %v129 = vld [vmem:[#allocation5 + $0x20] sm:$0xf]
    %v130 = vld [vmem:[#allocation5 + $0x24] sm:$0xf]
    %v131 = vld [vmem:[#allocation5 + $0x28] sm:$0xf]
    %v132 = vld [vmem:[#allocation5 + $0x2c] sm:$0xf]
    %v133 = vld [vmem:[#allocation5 + $0x30] sm:$0xf]
    %v134 = vld [vmem:[#allocation5 + $0x34] sm:$0xf]
    %v135 = vld [vmem:[#allocation5 + $0x38] sm:$0xf]
    %v136 = vld [vmem:[#allocation5 + $0x3c] sm:$0xf]
    %v137 = vld [vmem:[#allocation5 + $0x40] sm:$0xf]
    %v138 = vld [vmem:[#allocation5 + $0x44] sm:$0xf]
    %v139 = vld [vmem:[#allocation5 + $0x48] sm:$0xf]
    %v140 = vld [vmem:[#allocation5 + $0x4c] sm:$0xf]
    %v141 = vld [vmem:[#allocation5 + $0x50] sm:$0xf]
    %v142 = vld [vmem:[#allocation5 + $0x54] sm:$0xf]
    %v143 = vld [vmem:[#allocation5 + $0x58] sm:$0xf]
    %v144 = vld [vmem:[#allocation5 + $0x5c] sm:$0xf]
    %v145 = vld [vmem:[#allocation5 + $0x60] sm:$0xf]
    %v146 = vld [vmem:[#allocation5 + $0x64] sm:$0xf]
    %v147 = vld [vmem:[#allocation5 + $0x68] sm:$0xf]
    %v148 = vld [vmem:[#allocation5 + $0x6c] sm:$0xf]
    %v149 = vld [vmem:[#allocation5 + $0x70] sm:$0xf]
    %v150 = vld [vmem:[#allocation5 + $0x74] sm:$0xf]
    %v151 = vld [vmem:[#allocation5 + $0x78] sm:$0xf]
    %v152 = vld [vmem:[#allocation5 + $0x7c] sm:$0xf]
    %v153 = vld [vmem:[%s3] sm:$0x1]
    %v155 = vlaneseq
    %v156 = vshrl.u32 %v155, 7
    %v157 = vsub.s32 0, %v156
    %v158 = vrot.slane %v153, %v157
    %v162 = vunpack.c.l.s4 1966171168
    %v163 = vunpack.c.0.s8 %v162
    %v164 = vlaneseq
    %v165 = vshrl.u32 %v164, 7
    %v166 = vsub.s32 %v163, %v165
    %v167 = vrot.slane %v120, %v166
    %v168 = vcombine.high %v167, %v167
    %v170 = vunpack.c.l.s4 1966171168
    %v171 = vunpack.c.0.s8 %v170
    %v172 = vlaneseq
    %v173 = vshrl.u32 %v172, 7
    %v174 = vsub.s32 %v171, %v173
    %v175 = vrot.slane %v167, %v174
    %v177 = vunpack.c.l.s4 1966171168
    %v178 = vunpack.c.0.s8 %v177
    %v179 = vlaneseq
    %v180 = vshrl.u32 %v179, 7
    %v181 = vsub.s32 %v178, %v180
    %v182 = vrot.slane %v168, %v181
    %v217 = vunpack.c.l.b16 %v121
    %v218 = vunpack.c.l.b16 %v122
    %v219 = vunpack.c.l.b16 %v123
    %v220 = vunpack.c.l.b16 %v124
    %v221 = vunpack.c.l.b16 %v125
    %v222 = vunpack.c.l.b16 %v126
    %v223 = vunpack.c.l.b16 %v127
    %v224 = vunpack.c.l.b16 %v128
    %v225 = vunpack.c.l.b16 %v129
    %v226 = vunpack.c.l.b16 %v130
    %v227 = vunpack.c.l.b16 %v131
    %v228 = vunpack.c.l.b16 %v132
    %v229 = vunpack.c.l.b16 %v133
    %v230 = vunpack.c.l.b16 %v134
    %v231 = vunpack.c.l.b16 %v135
    %v232 = vunpack.c.l.b16 %v136
    %v233 = vunpack.c.l.b16 %v137
    %v234 = vunpack.c.l.b16 %v138
    %v235 = vunpack.c.l.b16 %v139
    %v236 = vunpack.c.l.b16 %v140
    %v237 = vunpack.c.l.b16 %v141
    %v238 = vunpack.c.l.b16 %v142
    %v239 = vunpack.c.l.b16 %v143
    %v240 = vunpack.c.l.b16 %v144
    %v241 = vunpack.c.l.b16 %v145
    %v242 = vunpack.c.l.b16 %v146
    %v243 = vunpack.c.l.b16 %v147
    %v244 = vunpack.c.l.b16 %v148
    %v245 = vunpack.c.l.b16 %v149
    %v246 = vunpack.c.l.b16 %v150
    %v247 = vunpack.c.l.b16 %v151
    %v248 = vunpack.c.l.b16 %v152
    %v249 = vpack.c.b16 %v218, %v217
    %v250 = vpack.c.b16 %v220, %v219
    %v251 = vpack.c.b16 %v222, %v221
    %v252 = vpack.c.b16 %v224, %v223
    %v253 = vpack.c.b16 %v226, %v225
    %v254 = vpack.c.b16 %v228, %v227
    %v255 = vpack.c.b16 %v230, %v229
    %v256 = vpack.c.b16 %v232, %v231
    %v257 = vpack.c.b16 %v234, %v233
    %v258 = vpack.c.b16 %v236, %v235
    %v259 = vpack.c.b16 %v238, %v237
    %v260 = vpack.c.b16 %v240, %v239
    %v261 = vpack.c.b16 %v242, %v241
    %v262 = vpack.c.b16 %v244, %v243
    %v263 = vpack.c.b16 %v246, %v245
    %v264 = vpack.c.b16 %v248, %v247
    %281 = vmatprep.subr.bf16.mxu0 0
    %282 = vmatpush1.bf16.msra.mxu0 %v256
    %283 = vmatprep.subr.bf16.mxu0 0
    %284 = vmatpush1.bf16.msra.mxu0 %v255
    %285 = vmatprep.subr.bf16.mxu0 0
    %286 = vmatpush1.bf16.msra.mxu0 %v254
    %287 = vmatprep.subr.bf16.mxu0 0
    %288 = vmatpush1.bf16.msra.mxu0 %v253
    %289 = vmatprep.subr.bf16.mxu0 0
    %290 = vmatpush1.bf16.msra.mxu0 %v252
    %291 = vmatprep.subr.bf16.mxu0 0
    %292 = vmatpush1.bf16.msra.mxu0 %v251
    %293 = vmatprep.subr.bf16.mxu0 0
    %294 = vmatpush1.bf16.msra.mxu0 %v250
    %295 = vmatprep.subr.bf16.mxu0 0
    %296 = vmatpush1.bf16.msra.mxu0 %v249
    %297 = vmatprep.subr.bf16.mxu0 0
    %298 = vmatpush2.bf16.msra.mxu0 %v264
    %299 = vmatprep.subr.bf16.mxu0 0
    %300 = vmatpush2.bf16.msra.mxu0 %v263
    %301 = vmatprep.subr.bf16.mxu0 0
    %302 = vmatpush2.bf16.msra.mxu0 %v262
    %303 = vmatprep.subr.bf16.mxu0 0
    %304 = vmatpush2.bf16.msra.mxu0 %v261
    %305 = vmatprep.subr.bf16.mxu0 0
    %306 = vmatpush2.bf16.msra.mxu0 %v260
    %307 = vmatprep.subr.bf16.mxu0 0
    %308 = vmatpush2.bf16.msra.mxu0 %v259
    %309 = vmatprep.subr.bf16.mxu0 0
    %310 = vmatpush2.bf16.msra.mxu0 %v258
    %311 = vmatprep.subr.bf16.mxu0 0
    %312 = vmatpush2.bf16.msra.mxu0 %v257
    %313 = vmatprep.mubr.bf16.mxu0 %v182
    %314 = vmatmul.mubr.bf16.gmra.mxu0 %v175
    %v315 = vpop.f32.mrf.mxu0
    %v316 = vadd.f32 %v158, %v315
    %v317 = vpop.f32.mrf.mxu0
    %v318 = vpop.f32.mrf.mxu0
    %v319 = vpop.f32.mrf.mxu0
    %320 = vdwg.mxu0
    %v321 = vld [vmem:[%s1] sm:$0x1]
    %v322 = vld [vmem:[#allocation7] sm:$0xf]
    %v323 = vld [vmem:[#allocation7 + $0x4] sm:$0xf]
    %v324 = vld [vmem:[#allocation7 + $0x8] sm:$0xf]
    %v325 = vld [vmem:[#allocation7 + $0xc] sm:$0xf]
    %v326 = vld [vmem:[#allocation7 + $0x10] sm:$0xf]
    %v327 = vld [vmem:[#allocation7 + $0x14] sm:$0xf]
    %v328 = vld [vmem:[#allocation7 + $0x18] sm:$0xf]
    %v329 = vld [vmem:[#allocation7 + $0x1c] sm:$0xf]
    %v330 = vld [vmem:[#allocation7 + $0x20] sm:$0xf]
    %v331 = vld [vmem:[#allocation7 + $0x24] sm:$0xf]
    %v332 = vld [vmem:[#allocation7 + $0x28] sm:$0xf]
    %v333 = vld [vmem:[#allocation7 + $0x2c] sm:$0xf]
    %v334 = vld [vmem:[#allocation7 + $0x30] sm:$0xf]
    %v335 = vld [vmem:[#allocation7 + $0x34] sm:$0xf]
    %v336 = vld [vmem:[#allocation7 + $0x38] sm:$0xf]
    %v337 = vld [vmem:[#allocation7 + $0x3c] sm:$0xf]
    %v338 = vld [vmem:[%s5] sm:$0x1]
    %v340 = vlaneseq
    %v341 = vshrl.u32 %v340, 7
    %v342 = vsub.s32 0, %v341
    %v343 = vrot.slane %v338, %v342
    %v361 = vunpack.c.l.b16 %v322
    %v362 = vunpack.c.l.b16 %v323
    %v363 = vunpack.c.l.b16 %v324
    %v364 = vunpack.c.l.b16 %v325
    %v365 = vunpack.c.l.b16 %v326
    %v366 = vunpack.c.l.b16 %v327
    %v367 = vunpack.c.l.b16 %v328
    %v368 = vunpack.c.l.b16 %v329
    %v369 = vunpack.c.l.b16 %v330
    %v370 = vunpack.c.l.b16 %v331
    %v371 = vunpack.c.l.b16 %v332
    %v372 = vunpack.c.l.b16 %v333
    %v373 = vunpack.c.l.b16 %v334
    %v374 = vunpack.c.l.b16 %v335
    %v375 = vunpack.c.l.b16 %v336
    %v376 = vunpack.c.l.b16 %v337
    %v377 = vpack.c.b16 %v362, %v361
    %v378 = vpack.c.b16 %v364, %v363
    %v379 = vpack.c.b16 %v366, %v365
    %v380 = vpack.c.b16 %v368, %v367
    %v381 = vpack.c.b16 %v370, %v369
    %v382 = vpack.c.b16 %v372, %v371
    %v383 = vpack.c.b16 %v374, %v373
    %v384 = vpack.c.b16 %v376, %v375
    %393 = vmatprep.subr.bf16.mxu0 0
    %394 = vmatpush1.bf16.msra.mxu0 %v384
    %395 = vmatprep.subr.bf16.mxu0 0
    %396 = vmatpush1.bf16.msra.mxu0 %v383
    %397 = vmatprep.subr.bf16.mxu0 0
    %398 = vmatpush1.bf16.msra.mxu0 %v382
    %399 = vmatprep.subr.bf16.mxu0 0
    %400 = vmatpush1.bf16.msra.mxu0 %v381
    %401 = vmatprep.subr.bf16.mxu0 0
    %402 = vmatpush1.bf16.msra.mxu0 %v380
    %403 = vmatprep.subr.bf16.mxu0 0
    %404 = vmatpush1.bf16.msra.mxu0 %v379
    %405 = vmatprep.subr.bf16.mxu0 0
    %406 = vmatpush1.bf16.msra.mxu0 %v378
    %407 = vmatprep.subr.bf16.mxu0 0
    %408 = vmatpush1.bf16.msra.mxu0 %v377
    %409 = vmatprep.subr.bf16.mxu0 0
    %410 = vmatpush2.bf16.msra.mxu0 0
    %411 = vmatprep.subr.bf16.mxu0 0
    %412 = vmatpush2.bf16.msra.mxu0 0
    %413 = vmatprep.subr.bf16.mxu0 0
    %414 = vmatpush2.bf16.msra.mxu0 0
    %415 = vmatprep.subr.bf16.mxu0 0
    %416 = vmatpush2.bf16.msra.mxu0 0
    %417 = vmatprep.subr.bf16.mxu0 0
    %418 = vmatpush2.bf16.msra.mxu0 0
    %419 = vmatprep.subr.bf16.mxu0 0
    %420 = vmatpush2.bf16.msra.mxu0 0
    %421 = vmatprep.subr.bf16.mxu0 0
    %422 = vmatpush2.bf16.msra.mxu0 0
    %423 = vmatprep.subr.bf16.mxu0 0
    %424 = vmatpush2.bf16.msra.mxu0 0
    %425 = vmatprep.mubr.bf16.mxu0 0
    %426 = vmatmul.mubr.bf16.gmra.mxu0 %v321
    %v427 = vpop.f32.mrf.mxu0
    %v428 = vadd.f32 %v343, %v427
    %v429 = vpop.f32.mrf.mxu0
    %v430 = vpop.f32.mrf.mxu0
    %v431 = vpop.f32.mrf.mxu0
    %432 = vdwg.mxu0
    %v433 = vtanh.pop %v316
    %v434 = vpack.c.bf16 %v433, %v433
    %v435 = vtanh.pop %v428
    %v436 = vpack.c.bf16 %v435, %v435
    %v437 = vld [vmem:[#allocation8] sm:$0xf]
    %v438 = vld [vmem:[#allocation8 + $0x4] sm:$0xf]
    %v439 = vld [vmem:[#allocation8 + $0x8] sm:$0xf]
    %v440 = vld [vmem:[#allocation8 + $0xc] sm:$0xf]
    %v441 = vld [vmem:[#allocation8 + $0x10] sm:$0xf]
    %v442 = vld [vmem:[#allocation8 + $0x14] sm:$0xf]
    %v443 = vld [vmem:[#allocation8 + $0x18] sm:$0xf]
    %v444 = vld [vmem:[#allocation8 + $0x1c] sm:$0xf]
    %v445 = vld [vmem:[#allocation8 + $0x20] sm:$0xf]
    %v446 = vld [vmem:[#allocation8 + $0x24] sm:$0xf]
    %v447 = vld [vmem:[#allocation8 + $0x28] sm:$0xf]
    %v448 = vld [vmem:[#allocation8 + $0x2c] sm:$0xf]
    %v449 = vld [vmem:[#allocation8 + $0x30] sm:$0xf]
    %v450 = vld [vmem:[#allocation8 + $0x34] sm:$0xf]
    %v451 = vld [vmem:[#allocation8 + $0x38] sm:$0xf]
    %v452 = vld [vmem:[#allocation8 + $0x3c] sm:$0xf]
    %v453 = vld [vmem:[#allocation10] sm:$0xf]
    %v454 = vld [vmem:[#allocation10 + $0x4] sm:$0xf]
    %v455 = vld [vmem:[#allocation10 + $0x8] sm:$0xf]
    %v456 = vld [vmem:[#allocation10 + $0xc] sm:$0xf]
    %v457 = vld [vmem:[#allocation10 + $0x10] sm:$0xf]
    %v458 = vld [vmem:[#allocation10 + $0x14] sm:$0xf]
    %v459 = vld [vmem:[#allocation10 + $0x18] sm:$0xf]
    %v460 = vld [vmem:[#allocation10 + $0x1c] sm:$0xf]
    %v461 = vld [vmem:[#allocation10 + $0x20] sm:$0xf]
    %v462 = vld [vmem:[#allocation10 + $0x24] sm:$0xf]
    %v463 = vld [vmem:[#allocation10 + $0x28] sm:$0xf]
    %v464 = vld [vmem:[#allocation10 + $0x2c] sm:$0xf]
    %v465 = vld [vmem:[#allocation10 + $0x30] sm:$0xf]
    %v466 = vld [vmem:[#allocation10 + $0x34] sm:$0xf]
    %v467 = vld [vmem:[#allocation10 + $0x38] sm:$0xf]
    %v468 = vld [vmem:[#allocation10 + $0x3c] sm:$0xf]
    %v485 = vunpack.c.l.b16 %v453
    %v486 = vunpack.c.l.b16 %v454
    %v487 = vunpack.c.l.b16 %v455
    %v488 = vunpack.c.l.b16 %v456
    %v489 = vunpack.c.l.b16 %v457
    %v490 = vunpack.c.l.b16 %v458
    %v491 = vunpack.c.l.b16 %v459
    %v492 = vunpack.c.l.b16 %v460
    %v493 = vunpack.c.l.b16 %v461
    %v494 = vunpack.c.l.b16 %v462
    %v495 = vunpack.c.l.b16 %v463
    %v496 = vunpack.c.l.b16 %v464
    %v497 = vunpack.c.l.b16 %v465
    %v498 = vunpack.c.l.b16 %v466
    %v499 = vunpack.c.l.b16 %v467
    %v500 = vunpack.c.l.b16 %v468
    %v501 = vpack.c.b16 %v486, %v485
    %v502 = vpack.c.b16 %v488, %v487
    %v503 = vpack.c.b16 %v490, %v489
    %v504 = vpack.c.b16 %v492, %v491
    %v505 = vpack.c.b16 %v494, %v493
    %v506 = vpack.c.b16 %v496, %v495
    %v507 = vpack.c.b16 %v498, %v497
    %v508 = vpack.c.b16 %v500, %v499
    %517 = vmatprep.subr.bf16.mxu0 0
    %518 = vmatpush1.bf16.msra.mxu0 %v508
    %519 = vmatprep.subr.bf16.mxu0 0
    %520 = vmatpush1.bf16.msra.mxu0 %v507
    %521 = vmatprep.subr.bf16.mxu0 0
    %522 = vmatpush1.bf16.msra.mxu0 %v506
    %523 = vmatprep.subr.bf16.mxu0 0
    %524 = vmatpush1.bf16.msra.mxu0 %v505
    %525 = vmatprep.subr.bf16.mxu0 0
    %526 = vmatpush1.bf16.msra.mxu0 %v504
    %527 = vmatprep.subr.bf16.mxu0 0
    %528 = vmatpush1.bf16.msra.mxu0 %v503
    %529 = vmatprep.subr.bf16.mxu0 0
    %530 = vmatpush1.bf16.msra.mxu0 %v502
    %531 = vmatprep.subr.bf16.mxu0 0
    %532 = vmatpush1.bf16.msra.mxu0 %v501
    %533 = vmatprep.subr.bf16.mxu0 0
    %534 = vmatpush2.bf16.msra.mxu0 0
    %535 = vmatprep.subr.bf16.mxu0 0
    %536 = vmatpush2.bf16.msra.mxu0 0
    %537 = vmatprep.subr.bf16.mxu0 0
    %538 = vmatpush2.bf16.msra.mxu0 0
    %539 = vmatprep.subr.bf16.mxu0 0
    %540 = vmatpush2.bf16.msra.mxu0 0
    %541 = vmatprep.subr.bf16.mxu0 0
    %542 = vmatpush2.bf16.msra.mxu0 0
    %543 = vmatprep.subr.bf16.mxu0 0
    %544 = vmatpush2.bf16.msra.mxu0 0
    %545 = vmatprep.subr.bf16.mxu0 0
    %546 = vmatpush2.bf16.msra.mxu0 0
    %547 = vmatprep.subr.bf16.mxu0 0
    %548 = vmatpush2.bf16.msra.mxu0 0
    %549 = vmatprep.mubr.bf16.mxu0 0
    %550 = vmatmul.mubr.bf16.gmra.mxu0 %v436
    %v551 = vpop.f32.mrf.mxu0
    %v552 = vadd.f32 0.0, %v551
    %v553 = vpop.f32.mrf.mxu0
    %v554 = vpop.f32.mrf.mxu0
    %v555 = vpop.f32.mrf.mxu0
    %556 = vdwg.mxu0
    %v573 = vunpack.c.l.b16 %v437
    %v574 = vunpack.c.l.b16 %v438
    %v575 = vunpack.c.l.b16 %v439
    %v576 = vunpack.c.l.b16 %v440
    %v577 = vunpack.c.l.b16 %v441
    %v578 = vunpack.c.l.b16 %v442
    %v579 = vunpack.c.l.b16 %v443
    %v580 = vunpack.c.l.b16 %v444
    %v581 = vunpack.c.l.b16 %v445
    %v582 = vunpack.c.l.b16 %v446
    %v583 = vunpack.c.l.b16 %v447
    %v584 = vunpack.c.l.b16 %v448
    %v585 = vunpack.c.l.b16 %v449
    %v586 = vunpack.c.l.b16 %v450
    %v587 = vunpack.c.l.b16 %v451
    %v588 = vunpack.c.l.b16 %v452
    %v589 = vpack.c.b16 %v574, %v573
    %v590 = vpack.c.b16 %v576, %v575
    %v591 = vpack.c.b16 %v578, %v577
    %v592 = vpack.c.b16 %v580, %v579
    %v593 = vpack.c.b16 %v582, %v581
    %v594 = vpack.c.b16 %v584, %v583
    %v595 = vpack.c.b16 %v586, %v585
    %v596 = vpack.c.b16 %v588, %v587
    %605 = vmatprep.subr.bf16.mxu0 0
    %606 = vmatpush1.bf16.msra.mxu0 %v596
    %607 = vmatprep.subr.bf16.mxu0 0
    %608 = vmatpush1.bf16.msra.mxu0 %v595
    %609 = vmatprep.subr.bf16.mxu0 0
    %610 = vmatpush1.bf16.msra.mxu0 %v594
    %611 = vmatprep.subr.bf16.mxu0 0
    %612 = vmatpush1.bf16.msra.mxu0 %v593
    %613 = vmatprep.subr.bf16.mxu0 0
    %614 = vmatpush1.bf16.msra.mxu0 %v592
    %615 = vmatprep.subr.bf16.mxu0 0
    %616 = vmatpush1.bf16.msra.mxu0 %v591
    %617 = vmatprep.subr.bf16.mxu0 0
    %618 = vmatpush1.bf16.msra.mxu0 %v590
    %619 = vmatprep.subr.bf16.mxu0 0
    %620 = vmatpush1.bf16.msra.mxu0 %v589
    %621 = vmatprep.subr.bf16.mxu0 0
    %622 = vmatpush2.bf16.msra.mxu0 0
    %623 = vmatprep.subr.bf16.mxu0 0
    %624 = vmatpush2.bf16.msra.mxu0 0
    %625 = vmatprep.subr.bf16.mxu0 0
    %626 = vmatpush2.bf16.msra.mxu0 0
    %627 = vmatprep.subr.bf16.mxu0 0
    %628 = vmatpush2.bf16.msra.mxu0 0
    %629 = vmatprep.subr.bf16.mxu0 0
    %630 = vmatpush2.bf16.msra.mxu0 0
    %631 = vmatprep.subr.bf16.mxu0 0
    %632 = vmatpush2.bf16.msra.mxu0 0
    %633 = vmatprep.subr.bf16.mxu0 0
    %634 = vmatpush2.bf16.msra.mxu0 0
    %635 = vmatprep.subr.bf16.mxu0 0
    %636 = vmatpush2.bf16.msra.mxu0 0
    %637 = vmatprep.mubr.bf16.mxu0 0
    %638 = vmatmul.mubr.bf16.gmra.mxu0 %v434
    %v639 = vpop.f32.mrf.mxu0
    %v640 = vadd.f32 %v552, %v639
    %v641 = vpop.f32.mrf.mxu0
    %v642 = vpop.f32.mrf.mxu0
    %v643 = vpop.f32.mrf.mxu0
    %644 = vdwg.mxu0
    %v645 = vld [vmem:[%s8] sm:$0x1]
    %v647 = vlaneseq
    %v648 = vshrl.u32 %v647, 7
    %v649 = vsub.s32 0, %v648
    %v650 = vrot.slane %v645, %v649
    %v652 = vadd.f32 %v640, %v650
    %v653 = vtanh.pop %v652
    %v654 = vpack.c.bf16 %v653, %v653
    %v655 = vld [vmem:[#allocation11] sm:$0xff]
    %v656 = vld [vmem:[#allocation11 + $0x8] sm:$0xff]
    %v657 = vld [vmem:[#allocation11 + $0x10] sm:$0xff]
    %v658 = vld [vmem:[#allocation11 + $0x18] sm:$0xff]
    %v659 = vld [vmem:[#allocation11 + $0x20] sm:$0xff]
    %v660 = vld [vmem:[#allocation11 + $0x28] sm:$0xff]
    %v661 = vld [vmem:[#allocation11 + $0x30] sm:$0xff]
    %v662 = vld [vmem:[#allocation11 + $0x38] sm:$0xff]
    %v663 = vld [vmem:[#allocation11 + $0x40] sm:$0xff]
    %v664 = vld [vmem:[#allocation11 + $0x48] sm:$0xff]
    %v665 = vld [vmem:[#allocation11 + $0x50] sm:$0xff]
    %v666 = vld [vmem:[#allocation11 + $0x58] sm:$0xff]
    %v667 = vld [vmem:[#allocation11 + $0x60] sm:$0xff]
    %v668 = vld [vmem:[#allocation11 + $0x68] sm:$0xff]
    %v669 = vld [vmem:[#allocation11 + $0x70] sm:$0xff]
    %v670 = vld [vmem:[#allocation11 + $0x78] sm:$0xff]
    %v671 = vld [vmem:[%s10] sm:$0x3]
    %v673 = vlaneseq
    %v674 = vshrl.u32 %v673, 7
    %v675 = vsub.s32 0, %v674
    %v676 = vrot.slane %v671, %v675
    %v677 = vlaneseq
    %v678 = vshrl.u32 %v677, 7
    %v679 = vsub.s32 1, %v678
    %v680 = vrot.slane %v671, %v679
    %v699 = vunpack.c.l.b16 %v655
    %v700 = vunpack.c.h.b16 %v655
    %v701 = vunpack.c.l.b16 %v656
    %v702 = vunpack.c.h.b16 %v656
    %v703 = vunpack.c.l.b16 %v657
    %v704 = vunpack.c.h.b16 %v657
    %v705 = vunpack.c.l.b16 %v658
    %v706 = vunpack.c.h.b16 %v658
    %v707 = vunpack.c.l.b16 %v659
    %v708 = vunpack.c.h.b16 %v659
    %v709 = vunpack.c.l.b16 %v660
    %v710 = vunpack.c.h.b16 %v660
    %v711 = vunpack.c.l.b16 %v661
    %v712 = vunpack.c.h.b16 %v661
    %v713 = vunpack.c.l.b16 %v662
    %v714 = vunpack.c.h.b16 %v662
    %v715 = vunpack.c.l.b16 %v663
    %v716 = vunpack.c.h.b16 %v663
    %v717 = vunpack.c.l.b16 %v664
    %v718 = vunpack.c.h.b16 %v664
    %v719 = vunpack.c.l.b16 %v665
    %v720 = vunpack.c.h.b16 %v665
    %v721 = vunpack.c.l.b16 %v666
    %v722 = vunpack.c.h.b16 %v666
    %v723 = vunpack.c.l.b16 %v667
    %v724 = vunpack.c.h.b16 %v667
    %v725 = vunpack.c.l.b16 %v668
    %v726 = vunpack.c.h.b16 %v668
    %v727 = vunpack.c.l.b16 %v669
    %v728 = vunpack.c.h.b16 %v669
    %v729 = vunpack.c.l.b16 %v670
    %v730 = vunpack.c.h.b16 %v670
    %v731 = vpack.c.b16 %v701, %v699
    %v732 = vpack.c.b16 %v702, %v700
    %v733 = vpack.c.b16 %v705, %v703
    %v734 = vpack.c.b16 %v706, %v704
    %v735 = vpack.c.b16 %v709, %v707
    %v736 = vpack.c.b16 %v710, %v708
    %v737 = vpack.c.b16 %v713, %v711
    %v738 = vpack.c.b16 %v714, %v712
    %v739 = vpack.c.b16 %v717, %v715
    %v740 = vpack.c.b16 %v718, %v716
    %v741 = vpack.c.b16 %v721, %v719
    %v742 = vpack.c.b16 %v722, %v720
    %v743 = vpack.c.b16 %v725, %v723
    %v744 = vpack.c.b16 %v726, %v724
    %v745 = vpack.c.b16 %v729, %v727
    %v746 = vpack.c.b16 %v730, %v728
    %763 = vmatprep.subr.bf16.mxu0 %v746
    %764 = vmatpush1.bf16.msra.mxu0 %v745
    %765 = vmatprep.subr.bf16.mxu0 %v744
    %766 = vmatpush1.bf16.msra.mxu0 %v743
    %767 = vmatprep.subr.bf16.mxu0 %v742
    %768 = vmatpush1.bf16.msra.mxu0 %v741
    %769 = vmatprep.subr.bf16.mxu0 %v740
    %770 = vmatpush1.bf16.msra.mxu0 %v739
    %771 = vmatprep.subr.bf16.mxu0 %v738
    %772 = vmatpush1.bf16.msra.mxu0 %v737
    %773 = vmatprep.subr.bf16.mxu0 %v736
    %774 = vmatpush1.bf16.msra.mxu0 %v735
    %775 = vmatprep.subr.bf16.mxu0 %v734
    %776 = vmatpush1.bf16.msra.mxu0 %v733
    %777 = vmatprep.subr.bf16.mxu0 %v732
    %778 = vmatpush1.bf16.msra.mxu0 %v731
    %779 = vmatprep.subr.bf16.mxu0 0
    %780 = vmatpush2.bf16.msra.mxu0 0
    %781 = vmatprep.subr.bf16.mxu0 0
    %782 = vmatpush2.bf16.msra.mxu0 0
    %783 = vmatprep.subr.bf16.mxu0 0
    %784 = vmatpush2.bf16.msra.mxu0 0
    %785 = vmatprep.subr.bf16.mxu0 0
    %786 = vmatpush2.bf16.msra.mxu0 0
    %787 = vmatprep.subr.bf16.mxu0 0
    %788 = vmatpush2.bf16.msra.mxu0 0
    %789 = vmatprep.subr.bf16.mxu0 0
    %790 = vmatpush2.bf16.msra.mxu0 0
    %791 = vmatprep.subr.bf16.mxu0 0
    %792 = vmatpush2.bf16.msra.mxu0 0
    %793 = vmatprep.subr.bf16.mxu0 0
    %794 = vmatpush2.bf16.msra.mxu0 0
    %795 = vmatprep.mubr.bf16.mxu0 0
    %796 = vmatmul.mubr.bf16.gmra.mxu0 %v654
    %v797 = vpop.f32.mrf.mxu0
    %v798 = vadd.f32 %v676, %v797
    %v799 = vpop.f32.mrf.mxu0
    %v800 = vadd.f32 %v680, %v799
    %v801 = vpop.f32.mrf.mxu0
    %v802 = vpop.f32.mrf.mxu0
    %803 = vdwg.mxu0
    %v804 = vxor.u32 %v798, 2147483648
    %v805 = vxor.u32 %v800, 2147483648
    %v806 = vmul.f32 %v804, 1.442695
    %v807 = vpow.pop %v806
    %v808 = vmul.f32 %v805, 1.442695
    %v809 = vpow.pop %v808
    %v810 = vadd.f32 %v807, 1.0
    %v811 = vadd.f32 %v809, 1.0
    %v812 = vrcp.pop %v810
    %v813 = vmul.f32 1.0, %v812
    %v814 = vrcp.pop %v811
    %v815 = vmul.f32 1.0, %v814
    %v818 = vcombine.low %v813, %v815
    %v820 = vunpack.c.l.s4 1983009808
    %v821 = vunpack.c.0.s8 %v820
    %v822 = vlaneseq
    %v823 = vshrl.u32 %v822, 7
    %v824 = vsub.s32 %v821, %v823
    %v825 = vrot.slane %v818, %v824
    %827 = vst [vmem:[#allocation13] sm:$0xf] %v825
    // Predicated region
    $region70: #{tpu_custom_call.1} parent=1 // pred_check
      _
    $region71: #{tpu_custom_call.1} parent=1 // pred_check_branch
      %829 = sbr.rel (0) target = $region73
    $region72: #{tpu_custom_call.1} parent=1 // pred_region
      %s831 = ssub.s32 64, 64
      %832 = vsyncadd [#allocation4], %s831
      %s834 = sshll.u32 [#allocation13], 4
      %s835 = int_to_ptr.vmem [resolvable:$true] %s834
      %837 = dma.vmem_to_hbm [thread:$0]  %s835, 64, %s11, [#allocation4]
    $region73: #{tpu_custom_call.1} parent=1 // pred_fallthru
      _
    // Predicated region
    $region74: #{tpu_custom_call.1} parent=1 // pred_check
      _
    $region75: #{tpu_custom_call.1} parent=1 // pred_check_branch
      %839 = sbr.rel (0) target = $region77
    $region76: #{tpu_custom_call.1} parent=1 // pred_region
      %840 = dma.done [#allocation4], 64
    $region77: #{tpu_custom_call.1} parent=1 // pred_fallthru
      _
    %841 = vsyncpa [#allocation3], 1
    %842 = vsyncpa [#allocation6], 1
    %843 = vsyncpa [#allocation9], 1
    %844 = vsyncpa [#allocation12], 1
    %845 = vsyncpa [#allocation4], 1

</llo_original>
